<compile_context>
chip_gen: v7x
topology: tpu7x:2x2x1
jax: 0.10.0
libtpu: 0.0.40
codegen_flags: <defaults>
</compile_context>

<pallas_src>
import functools

import jax
import jax.numpy as jnp
from jax import lax
from jax.experimental import pallas as pl
from jax.experimental.pallas import tpu as pltpu


_VMEM_FLOOR = 16 * 1024 * 1024     # v5e scoped default
_VMEM_CAP = 48 * 1024 * 1024       # leave headroom under v7x's 64 MiB physical VMEM / TC
_STEP_BUDGET = 16 * 1024 * 1024    # per-grid-step working-set target (2x headroom <= cap)


def _fused_weights(weight, dtype):
    # (C_out, C_in, K) -> (C_out, K*C_in): all K taps become one MXU contraction.
    c_out, c_in, k = weight.shape
    return jnp.transpose(weight, (0, 2, 1)).reshape(c_out, k * c_in).astype(dtype)


# --------------------------------------------------------------------------------------
# Kernels
# --------------------------------------------------------------------------------------

def _causal_conv_tiled_kernel(x_ref, w_ref, b_ref, o_ref, *scratch, kernel_size,
                              dilation, pad, t_tile, num_t_tiles):
    """One (batch row b, time tile ti) grid step.

    x_ref: (C_in, T_tile)   current input tile (batch dim squeezed away)
    w_ref: (C_out, K*C_in)  fused weights (constant block -> resident in VMEM)
    b_ref: (C_out, 1)       f32 bias column
    o_ref: (C_out, T_tile)  output tile (T on lanes -> lane-dense stores for T_tile%128==0)
    scratch[0] (only when num_t_tiles > 1 and pad > 0):
        halo_ref: (C_in, pad) = last `pad` input columns of the previous time tile.
    """
    c_in = x_ref.shape[0]
    need_halo = pad > 0 and num_t_tiles > 1
    halo_ref = scratch[0] if need_halo else None

    if need_halo:
        # Correctness note: the halo carry relies on the time axis being the innermost
        # ("arbitrary") grid dimension so that all time tiles of one batch row run
        # back-to-back, in order, on the same core.  Do not reorder the grid.
        @pl.when(pl.program_id(1) == 0)
        def _zero_halo():
            # First time tile of this batch row: halo == Conv1d's zero left-padding.
            halo_ref[...] = jnp.zeros_like(halo_ref)

    x = x_ref[...]

    # Stack the K shifted windows along sublanes -> one (K*C_in, T_tile) MXU operand.
    windows = []
    for j in range(kernel_size):
        off = j * dilation
        left = pad - off                    # causal-history columns this tap needs
        if left <= 0:
            windows.append(x)
        elif need_halo:
            if left >= t_tile:              # only when pad == t_tile and j == 0
                windows.append(halo_ref[:, off:off + t_tile])
            else:
                windows.append(jnp.concatenate(
                    [halo_ref[:, off:pad], x[:, :t_tile - left]], axis=1))
        else:                               # single time tile: history is the zero padding
            if left >= t_tile:
                windows.append(jnp.zeros_like(x))
            else:
                windows.append(jnp.concatenate(
                    [jnp.zeros((c_in, left), x.dtype), x[:, :t_tile - left]], axis=1))
    stacked = windows[0] if kernel_size == 1 else jnp.concatenate(windows, axis=0)

    acc = jnp.dot(w_ref[...], stacked, preferred_element_type=jnp.float32)
    o_ref[...] = (acc + b_ref[...]).astype(o_ref.dtype)

    if need_halo:
        # Carry the last `pad` input columns for the next time tile of this batch row.
        halo_ref[...] = x[:, t_tile - pad:]


def _causal_conv_packed_kernel(x_ref, w_ref, b_ref, o_ref, *, kernel_size, dilation,
                               pad, seq_len):
    """Small-T path: single grid step, all batch rows lane-packed.

    x_ref: (C_in, B*T)  lane index = b*T + t
    w_ref: (C_out, K*C_in);  b_ref: (C_out, 1);  o_ref: (C_out, B*T)
    """
    c_in, n = x_ref.shape
    x = x_ref[...]
    # Position of each lane inside its own length-T sequence (causal mask across the
    # zero left-padding; also stops windows from leaking across batch boundaries).
    t_in_seq = lax.broadcasted_iota(jnp.int32, (c_in, n), 1) % seq_len

    windows = []
    for j in range(kernel_size):
        shift = pad - j * dilation          # how far into the past this tap looks
        if shift == 0:
            windows.append(x)
        elif shift >= seq_len:              # whole window falls in the zero padding
            windows.append(jnp.zeros_like(x))
        else:
            shifted = jnp.concatenate(
                [jnp.zeros((c_in, shift), x.dtype), x[:, :n - shift]], axis=1)
            windows.append(jnp.where(t_in_seq >= shift, shifted, jnp.zeros_like(x)))
    stacked = windows[0] if kernel_size == 1 else jnp.concatenate(windows, axis=0)

    acc = jnp.dot(w_ref[...], stacked, preferred_element_type=jnp.float32)
    o_ref[...] = (acc + b_ref[...]).astype(o_ref.dtype)


# --------------------------------------------------------------------------------------
# Wrapper
# --------------------------------------------------------------------------------------

def _packed_step_bytes(n, c_in, c_out, k, isz):
    return ((2 * c_in + k * c_in + 2 * c_out) * n * isz   # x / stacked operand / out
            + c_out * n * 4                               # f32 matmul result
            + 2 * k * c_out * c_in * isz + 2 * c_out * 4)


def _tiled_step_bytes(tt, c_in, c_out, k, pad, isz, need_halo):
    return (2 * c_in * tt * isz             # input block, double-buffered
            + 2 * c_out * tt * isz          # output block, double-buffered
            + k * c_in * tt * isz           # stacked MXU operand
            + c_out * tt * 4                # f32 matmul result / accumulator
            + 2 * k * c_out * c_in * isz    # fused weights (resident)
            + 2 * c_out * 4                 # bias
            + (c_in * pad * isz if need_halo else 0))


def _choose_t_tile(t, pad, step_bytes):
    """Largest time tile (full T preferred) whose per-step working set fits the budget."""
    if t <= 128 or t % 128 != 0 or step_bytes(t) <= _STEP_BUDGET:
        return t
    cands = [d for d in range(128, t, 128) if t % d == 0 and d >= pad]
    if not cands:
        return t
    for tt in sorted(cands, reverse=True):
        if step_bytes(tt) <= _STEP_BUDGET:
            return tt
    return min(cands)   # huge channel counts: take the smallest legal (lane-dense) tile


def _vmem_limit(step_bytes):
    return int(min(_VMEM_CAP, max(_VMEM_FLOOR, 2 * step_bytes)))


def causal_conv1d(x_ncl, weight, bias, *, dilation=1, t_tile=None):
    """Causal dilated Conv1d matching CausalConvolution.forward.

    x_ncl: (B, C_in, T); weight: (C_out, C_in, K); bias: (C_out,) -> (B, C_out, T).
    Compute dtype follows x_ncl.dtype (pass bf16 activations end-to-end for the
    mem-bound win); accumulation is always f32.
    """
    b, c_in, t = x_ncl.shape
    c_out, c_in_w, k = weight.shape
    assert c_in_w == c_in, (c_in_w, c_in)
    pad = (k - 1) * dilation
    dtype = x_ncl.dtype
    isz = jnp.dtype(dtype).itemsize

    w_f = _fused_weights(weight, dtype)                     # (C_out, K*C_in), tiny one-off
    b_col = bias.astype(jnp.float32).reshape(c_out, 1)

    flops = 2 * b * t * c_in * c_out * k
    bytes_accessed = (b * c_in * t * isz + k * c_out * c_in * isz + c_out * 4
                      + b * c_out * t * isz)

    # ---- small-T path (TMDN: sequence_length = 16): one step, batch packed on lanes ----
    n = b * t
    if (t_tile is None and t < 128
            and _packed_step_bytes(n, c_in, c_out, k, isz) <= _STEP_BUDGET):
        # Layout plumbing on tiny arrays (T < 128): pack batch onto lanes so the kernel
        # is one fused matmul instead of B grid steps with B tiny matmuls.
        x_packed = jnp.transpose(x_ncl, (1, 0, 2)).reshape(c_in, n)
        kernel = functools.partial(_causal_conv_packed_kernel, kernel_size=k,
                                   dilation=dilation, pad=pad, seq_len=t)
        out_packed = pl.pallas_call(
            kernel,
            out_shape=jax.ShapeDtypeStruct((c_out, n), dtype),
            grid=(1,),
            in_specs=[
                pl.BlockSpec((c_in, n), lambda i: (0, 0)),
                pl.BlockSpec((c_out, k * c_in), lambda i: (0, 0)),
                pl.BlockSpec((c_out, 1), lambda i: (0, 0)),
            ],
            out_specs=pl.BlockSpec((c_out, n), lambda i: (0, 0)),
            compiler_params=pltpu.CompilerParams(
                dimension_semantics=("arbitrary",),
                vmem_limit_bytes=_vmem_limit(
                    _packed_step_bytes(n, c_in, c_out, k, isz))),
            cost_estimate=pl.CostEstimate(
                flops=flops, transcendentals=0, bytes_accessed=bytes_accessed),
        )(x_packed, w_f, b_col)
        return jnp.transpose(out_packed.reshape(c_out, b, t), (1, 0, 2))

    # ---- general path: grid = (batch, time tiles), causal halo carried in VMEM ----
    step_fn = lambda tt: _tiled_step_bytes(tt, c_in, c_out, k, pad, isz, tt < t)
    if t_tile is None:
        t_tile = _choose_t_tile(t, pad, step_fn)
    assert t % t_tile == 0, (t, t_tile)
    nt = t // t_tile
    need_halo = pad > 0 and nt > 1
    if need_halo:
        assert t_tile >= pad, ("halo carry requires T_tile >= (k-1)*dilation", t_tile, pad)

    kernel = functools.partial(_causal_conv_tiled_kernel, kernel_size=k,
                               dilation=dilation, pad=pad, t_tile=t_tile,
                               num_t_tiles=nt)

    return pl.pallas_call(
        kernel,
        out_shape=jax.ShapeDtypeStruct((b, c_out, t), dtype),
        grid=(b, nt),
        in_specs=[
            # Current input tile; batch dim squeezed so the kernel body is pure 2-D.
            pl.BlockSpec((None, c_in, t_tile), lambda bi, ti: (bi, 0, ti)),
            # Fused weights / bias: whole (small) arrays, constant block -> resident.
            pl.BlockSpec((c_out, k * c_in), lambda bi, ti: (0, 0)),
            pl.BlockSpec((c_out, 1), lambda bi, ti: (0, 0)),
        ],
        out_specs=pl.BlockSpec((None, c_out, t_tile), lambda bi, ti: (bi, 0, ti)),
        scratch_shapes=([pltpu.VMEM((c_in, pad), dtype)] if need_halo else []),
        compiler_params=pltpu.CompilerParams(
            # Batch shards across TensorCores (megacore); the time axis MUST stay the
            # innermost, sequential ("arbitrary") axis for the halo carry to be valid.
            dimension_semantics=("parallel", "arbitrary"),
            vmem_limit_bytes=_vmem_limit(step_fn(t_tile))),
        cost_estimate=pl.CostEstimate(
            flops=flops, transcendentals=0, bytes_accessed=bytes_accessed),
    )(x_ncl, w_f, b_col)


# --------------------------------------------------------------------------------------
# Reference + self-test
# --------------------------------------------------------------------------------------

def _reference_causal_conv1d(x_ncl, weight, bias, *, dilation=1):
    """Pure-JAX reference matching the PyTorch module."""
    k = weight.shape[-1]
    pad = (k - 1) * dilation
    out = lax.conv_general_dilated(
        x_ncl, weight,
        window_strides=(1,),
        padding=[(pad, pad)],
        rhs_dilation=(dilation,),
        dimension_numbers=("NCH", "OIH", "NCH"),
    ) + bias[None, :, None]
    return out[:, :, :-pad] if pad > 0 else out


if __name__ == "__main__":
    B, C_IN, C_OUT, KSIZE = 2, 4, 8, 3

    key = jax.random.PRNGKey(0)
    kx1, kx2, kw, kb = jax.random.split(key, 4)

    # Deterministic Conv1d-style init: U(-bound, bound), bound = 1/sqrt(C_in * K).
    bound = 1.0 / (C_IN * KSIZE) ** 0.5
    weight = jax.random.uniform(
        kw, (C_OUT, C_IN, KSIZE), minval=-bound, maxval=bound, dtype=jnp.float32)
    bias = jax.random.uniform(
        kb, (C_OUT,), minval=-bound, maxval=bound, dtype=jnp.float32)

    # Case 1: module-like shape (sequence_length=16) -> lane-packed single-step path.
    T1, DIL1 = 16, 2
    x1 = jax.random.normal(kx1, (B, C_IN, T1), dtype=jnp.float32)
    out1 = jax.block_until_ready(causal_conv1d(x1, weight, bias, dilation=DIL1))
    ref1 = _reference_causal_conv1d(x1, weight, bias, dilation=DIL1)
    assert out1.shape == (B, C_OUT, T1), out1.shape
    assert jnp.allclose(out1, ref1, atol=1e-5, rtol=1e-5), "mismatch (packed, T=16, d=2)"

    # Case 2: large dilation (pad > T), as in TMDN's deeper layers (dilation = 2**i).
    DIL2 = 32
    out2 = jax.block_until_ready(causal_conv1d(x1, weight, bias, dilation=DIL2))
    ref2 = _reference_causal_conv1d(x1, weight, bias, dilation=DIL2)
    assert jnp.allclose(out2, ref2, atol=1e-5, rtol=1e-5), "mismatch (packed, pad > T)"

    # Case 3: longer sequence -> tiled path, single full-T tile (VMEM-budgeted).
    T3, DIL3 = 256, 2
    x3 = jax.random.normal(kx2, (B, C_IN, T3), dtype=jnp.float32)
    out3 = jax.block_until_ready(causal_conv1d(x3, weight, bias, dilation=DIL3))
    ref3 = _reference_causal_conv1d(x3, weight, bias, dilation=DIL3)
    assert out3.shape == (B, C_OUT, T3), out3.shape
    assert jnp.allclose(out3, ref3, atol=1e-5, rtol=1e-5), "mismatch (tiled, T=256)"

    # Case 4: forced time tiling (nt > 1) to exercise the pipelined halo-carry path.
    out4 = jax.block_until_ready(
        causal_conv1d(x3, weight, bias, dilation=DIL3, t_tile=128))
    assert jnp.allclose(out4, ref3, atol=1e-5, rtol=1e-5), "mismatch (halo carry, T=256)"

    print("KERNEL_OK")
</pallas_src>

<mosaic_0001>
module attributes {stable_mosaic.version = 11 : i64} {
  func.func @_causal_conv_packed_kernel(%arg0: i32, %arg1: memref<4x32xf32, #tpu.memory_space<vmem>>, %arg2: memref<8x12xf32, #tpu.memory_space<vmem>>, %arg3: memref<8x1xf32, #tpu.memory_space<vmem>>, %arg4: memref<8x32xf32, #tpu.memory_space<vmem>>) attributes {dimension_semantics = [#tpu.dimension_semantics<arbitrary>], iteration_bounds = array<i64: 1>, scalar_prefetch = 0 : i64, scratch_operands = 0 : i64, tpu.core_type = #tpu.core_type<tc>, window_params = [{pipeline_mode = #tpu.pipeline_mode<synchronous>, transform_indices = @transform_0, window_bounds = array<i64: 4, 32>}, {pipeline_mode = #tpu.pipeline_mode<synchronous>, transform_indices = @transform_1, window_bounds = array<i64: 8, 12>}, {pipeline_mode = #tpu.pipeline_mode<synchronous>, transform_indices = @transform_2, window_bounds = array<i64: 8, 1>}, {pipeline_mode = #tpu.pipeline_mode<synchronous>, transform_indices = @transform_3, window_bounds = array<i64: 8, 32>}]} {
    %c0 = arith.constant 0 : index
    %c0_0 = arith.constant 0 : index
    %0 = vector.load %arg1[%c0, %c0_0] : memref<4x32xf32, #tpu.memory_space<vmem>>, vector<4x32xf32>
    %1 = tpu.iota {dimensions = array<i32: 1>} : vector<4x32xi32>
    %c16_i32 = arith.constant 16 : i32
    %c0_i32 = arith.constant 0 : i32
    %2 = arith.cmpi eq, %c16_i32, %c0_i32 : i32
    %c1_i32 = arith.constant 1 : i32
    %3 = arith.select %2, %c1_i32, %c16_i32 : i32
    %4 = vector.broadcast %3 : i32 to vector<4x32xi32>
    %5 = arith.remsi %1, %4 : vector<4x32xi32>
    %c0_i32_1 = arith.constant 0 : i32
    %6 = vector.broadcast %c0_i32_1 : i32 to vector<4x32xi32>
    %7 = arith.cmpi ne, %5, %6 : vector<4x32xi32>
    %c0_i32_2 = arith.constant 0 : i32
    %8 = vector.broadcast %c0_i32_2 : i32 to vector<4x32xi32>
    %9 = arith.cmpi slt, %5, %8 : vector<4x32xi32>
    %c0_i32_3 = arith.constant 0 : i32
    %10 = arith.cmpi slt, %3, %c0_i32_3 : i32
    %11 = vector.broadcast %10 : i1 to vector<4x32xi1>
    %12 = vector.broadcast %11 : vector<4x32xi1> to vector<4x32xi1>
    %13 = arith.xori %9, %12 : vector<4x32xi1>
    %14 = arith.andi %13, %7 : vector<4x32xi1>
    %15 = vector.broadcast %3 : i32 to vector<4x32xi32>
    %16 = arith.addi %5, %15 : vector<4x32xi32>
    %17 = arith.select %14, %16, %5 : vector<4x32xi1>, vector<4x32xi32>
    %cst = arith.constant 0.000000e+00 : f32
    %18 = vector.broadcast %cst : f32 to vector<4x4xf32>
    %19 = vector.extract_strided_slice %0 {offsets = [0, 0], sizes = [4, 28], strides = [1, 1]} : vector<4x32xf32> to vector<4x28xf32>
    %20 = tpu.concatenate %18, %19 in 1 : vector<4x4xf32>, vector<4x28xf32> -> vector<4x32xf32>
    %c4_i32 = arith.constant 4 : i32
    %21 = vector.broadcast %c4_i32 : i32 to vector<4x32xi32>
    %22 = arith.cmpi sge, %17, %21 : vector<4x32xi32>
    %cst_4 = arith.constant 0.000000e+00 : f32
    %23 = vector.broadcast %cst_4 : f32 to vector<4x32xf32>
    %24 = arith.select %22, %20, %23 : vector<4x32xi1>, vector<4x32xf32>
    %cst_5 = arith.constant 0.000000e+00 : f32
    %25 = vector.broadcast %cst_5 : f32 to vector<4x2xf32>
    %26 = vector.extract_strided_slice %0 {offsets = [0, 0], sizes = [4, 30], strides = [1, 1]} : vector<4x32xf32> to vector<4x30xf32>
    %27 = tpu.concatenate %25, %26 in 1 : vector<4x2xf32>, vector<4x30xf32> -> vector<4x32xf32>
    %c2_i32 = arith.constant 2 : i32
    %28 = vector.broadcast %c2_i32 : i32 to vector<4x32xi32>
    %29 = arith.cmpi sge, %17, %28 : vector<4x32xi32>
    %cst_6 = arith.constant 0.000000e+00 : f32
    %30 = vector.broadcast %cst_6 : f32 to vector<4x32xf32>
    %31 = arith.select %29, %27, %30 : vector<4x32xi1>, vector<4x32xf32>
    %32 = tpu.concatenate %24, %31, %0 in 0 : vector<4x32xf32>, vector<4x32xf32>, vector<4x32xf32> -> vector<12x32xf32>
    %c0_7 = arith.constant 0 : index
    %c0_8 = arith.constant 0 : index
    %33 = vector.load %arg2[%c0_7, %c0_8] : memref<8x12xf32, #tpu.memory_space<vmem>>, vector<8x12xf32>
    %cst_9 = arith.constant dense<0.000000e+00> : vector<8x32xf32>
    %34 = tpu.matmul %33, %32, %cst_9 {dimension_numbers = #tpu.dot_dimension_numbers<[1], [0], [0], [1], [0, 0, 1, 1], [], []>} : vector<8x12xf32>, vector<12x32xf32>, vector<8x32xf32> -> vector<8x32xf32>
    %c0_10 = arith.constant 0 : index
    %c0_11 = arith.constant 0 : index
    %35 = vector.load %arg3[%c0_10, %c0_11] : memref<8x1xf32, #tpu.memory_space<vmem>>, vector<8x1xf32>
    %36 = vector.broadcast %35 : vector<8x1xf32> to vector<8x32xf32>
    %37 = arith.addf %34, %36 : vector<8x32xf32>
    %c0_12 = arith.constant 0 : index
    %c0_13 = arith.constant 0 : index
    %38 = vector.load %arg4[%c0_12, %c0_13] : memref<8x32xf32, #tpu.memory_space<vmem>>, vector<8x32xf32>
    tpu.vector_store %arg4[%c0_12, %c0_13], %37 {strides = array<i32>} : memref<8x32xf32, #tpu.memory_space<vmem>>, vector<8x32xf32>,
    return
  }
  func.func @transform_0(%arg0: i32) -> (i32, i32) {
    %c0_i32 = arith.constant 0 : i32
    %c0_i32_0 = arith.constant 0 : i32
    %c0_i32_1 = arith.constant 0 : i32
    return %c0_i32, %c0_i32_0 : i32, i32
  }
  func.func @transform_1(%arg0: i32) -> (i32, i32) {
    %c0_i32 = arith.constant 0 : i32
    %c0_i32_0 = arith.constant 0 : i32
    %c0_i32_1 = arith.constant 0 : i32
    return %c0_i32, %c0_i32_0 : i32, i32
  }
  func.func @transform_2(%arg0: i32) -> (i32, i32) {
    %c0_i32 = arith.constant 0 : i32
    %c0_i32_0 = arith.constant 0 : i32
    %c0_i32_1 = arith.constant 0 : i32
    return %c0_i32, %c0_i32_0 : i32, i32
  }
  func.func @transform_3(%arg0: i32) -> (i32, i32) {
    %c0_i32 = arith.constant 0 : i32
    %c0_i32_0 = arith.constant 0 : i32
    %c0_i32_1 = arith.constant 0 : i32
    return %c0_i32, %c0_i32_0 : i32, i32
  }
}

</mosaic_0001>

<llo_original>
// kernel: tpu_custom_call.1
$region0: #{tpu_custom_call.1}
  #allocation0 [shape = 'u32[]', space=smem, size = 0x4, offset = 0x4, fixed_abs, tag = 'smem constant byte address 0x4 - core index']
  #allocation1 [shape = 'u32[144,128]{1,0:T(1,128)}', space=vmem, size = 0x12000, scoped, tag = 'internal scratch']
  %s0 = inlined_call_operand.vmem [shape: f32[4,32], index: 0, kind: input, shape index: {}]
  %s1 = inlined_call_operand.vmem [shape: f32[8,12], index: 1, kind: input, shape index: {}]
  %s2 = inlined_call_operand.vmem [shape: f32[8,1], index: 2, kind: input, shape index: {}]
  %s3 = inlined_call_operand.hbm [shape: f32[8,32], index: 3, kind: output, shape index: {}]
  %s4 = sld [smem:[#allocation0]]
  $region22: #{tpu_custom_call.1} parent=0
    _
  %s6 = ssub.s32 1, %s4
  %s7 = scalar_select 0, %s6, %s4
  $region1: #{tpu_custom_call.1} parent=0
    #allocation2 [shape = 'u8[4096]{0}', space=vmem, size = 0x1000, scoped, tag = 'output window, operand 0, single buffered']
    #allocation3 [shape = 's32[1]{0}', space=sflag, size = 0x4, scoped, tag = 'scoped memory for tpu_custom_call.1']
    %8 = vsyncpa [#allocation3], 0
    // Predicated region
    $region2: #{tpu_custom_call.1} parent=1 // pred_check
      _
    $region3: #{tpu_custom_call.1} parent=1 // pred_check_branch
      %10 = sbr.rel (0) target = $region5
    $region4: #{tpu_custom_call.1} parent=1 // pred_region
      _
    $region5: #{tpu_custom_call.1} parent=1 // pred_fallthru
      _
    // Predicated region
    $region6: #{tpu_custom_call.1} parent=1 // pred_check
      _
    $region7: #{tpu_custom_call.1} parent=1 // pred_check_branch
      %12 = sbr.rel (0) target = $region9
    $region8: #{tpu_custom_call.1} parent=1 // pred_region
      _
    $region9: #{tpu_custom_call.1} parent=1 // pred_fallthru
      _
    // Predicated region
    $region10: #{tpu_custom_call.1} parent=1 // pred_check
      _
    $region11: #{tpu_custom_call.1} parent=1 // pred_check_branch
      %14 = sbr.rel (0) target = $region13
    $region12: #{tpu_custom_call.1} parent=1 // pred_region
      _
    $region13: #{tpu_custom_call.1} parent=1 // pred_fallthru
      _
    %v15 = vld [vmem:[%s0] sm:$0xf]
    %v16 = vlaneseq
    %v17 = vand.u32 %v16, 127
    %vm18 = vcmp.lt.s32.totalorder %v17, 0
    %v19 = vsub.s32 0, %v17
    %v20 = vsel %vm18, %v19, %v17
    %v21 = vshrl.u32 %v20, 4
    %v22 = vand.u32 %v20, 15
    %v23 = vsub.s32 0, %v22
    %v24 = vsel %vm18, %v23, %v22
    %vm25 = vcmp.ne.s32.totalorder %v24, 0
    %vm26 = vcmp.lt.s32.totalorder %v24, 0
    %vm27 = vmand %vm26, %vm25
    %v28 = vadd.s32 %v24, 16
    %v29 = vsel %vm27, %v28, %v24
    %31 = vrot.lane.b32.xlu0 %v15, 4
    %v32 = vpop.permute.xlu0 %31
    %vm34 = vcmask 31744
    %v35 = vsel %vm34, 0.0, %v32
    %vm36 = vcmp.ge.s32.totalorder %v29, 4
    %v37 = vsel %vm36, %v35, 0.0
    %38 = vrot.lane.b32.xlu0 %v15, 2
    %v39 = vpop.permute.xlu0 %38
    %vm41 = vcmask 15360
    %v42 = vsel %vm41, 0.0, %v39
    %vm43 = vcmp.ge.s32.totalorder %v29, 2
    %v44 = vsel %vm43, %v42, 0.0
    %v46 = vrot.slane %v44, 4
    %vm48 = vcmask 1043456
    %v49 = vsel %vm48, %v37, %v46
    %v50 = vld [vmem:[%s1] sm:$0xff]
    %v51 = vld [vmem:[%s2] sm:$0xff]
    %53 = vset.pattern.permute.xlu0 0
    %54 = vperm.xlu0 %53, %v51
    %v55 = vpop.permute.xlu0 %54
    %vm57 = vcmask 97280
    %v59 = vsel %vm57, %v50, 0
    %v61 = vsel %vm48, %v15, 0
    %63 = vmatprep.subr.mxu0 0.0
    %64 = vmatpush1.msra.mxu0 %v49
    %65 = vmatprep.subr.mxu0 0.0
    %66 = vmatpush1.msra.mxu0 %v61
    %67 = vmatprep.subr.mxu0 0.0
    %68 = vmatpush1.msra.mxu0 0.0
    %69 = vmatprep.subr.mxu0 0.0
    %70 = vmatpush1.msra.mxu0 0.0
    %71 = vmatprep.subr.mxu0 0.0
    %72 = vmatpush1.msra.mxu0 0.0
    %73 = vmatprep.subr.mxu0 0.0
    %74 = vmatpush1.msra.mxu0 0.0
    %75 = vmatprep.subr.mxu0 0.0
    %76 = vmatpush1.msra.mxu0 0.0
    %77 = vmatprep.subr.mxu0 0.0
    %78 = vmatpush1.msra.mxu0 0.0
    %79 = vmatprep.subr.mxu0 0.0
    %80 = vmatpush1.msra.mxu0 0.0
    %81 = vmatprep.subr.mxu0 0.0
    %82 = vmatpush1.msra.mxu0 0.0
    %83 = vmatprep.subr.mxu0 0.0
    %84 = vmatpush1.msra.mxu0 0.0
    %85 = vmatprep.subr.mxu0 0.0
    %86 = vmatpush1.msra.mxu0 0.0
    %87 = vmatprep.subr.mxu0 0.0
    %88 = vmatpush1.msra.mxu0 0.0
    %89 = vmatprep.subr.mxu0 0.0
    %90 = vmatpush1.msra.mxu0 0.0
    %91 = vmatprep.subr.mxu0 0.0
    %92 = vmatpush1.msra.mxu0 0.0
    %93 = vmatprep.subr.mxu0 0.0
    %94 = vmatpush1.msra.mxu0 0.0
    %95 = vmatprep.subr.mxu0 0.0
    %96 = vmatpush1.msra.mxu0 0.0
    %97 = vmatprep.subr.mxu0 0.0
    %98 = vmatpush1.msra.mxu0 0.0
    %99 = vmatprep.subr.mxu0 0.0
    %100 = vmatpush1.msra.mxu0 0.0
    %101 = vmatprep.subr.mxu0 0.0
    %102 = vmatpush1.msra.mxu0 0.0
    %103 = vmatprep.subr.mxu0 0.0
    %104 = vmatpush1.msra.mxu0 0.0
    %105 = vmatprep.subr.mxu0 0.0
    %106 = vmatpush1.msra.mxu0 0.0
    %107 = vmatprep.subr.mxu0 0.0
    %108 = vmatpush1.msra.mxu0 0.0
    %109 = vmatprep.subr.mxu0 0.0
    %110 = vmatpush1.msra.mxu0 0.0
    %111 = vmatprep.subr.mxu0 0.0
    %112 = vmatpush1.msra.mxu0 0.0
    %113 = vmatprep.subr.mxu0 0.0
    %114 = vmatpush1.msra.mxu0 0.0
    %115 = vmatprep.subr.mxu0 0.0
    %116 = vmatpush1.msra.mxu0 0.0
    %117 = vmatprep.subr.mxu0 0.0
    %118 = vmatpush1.msra.mxu0 0.0
    %119 = vmatprep.subr.mxu0 0.0
    %120 = vmatpush1.msra.mxu0 0.0
    %121 = vmatprep.subr.mxu0 0.0
    %122 = vmatpush1.msra.mxu0 0.0
    %123 = vmatprep.subr.mxu0 0.0
    %124 = vmatpush1.msra.mxu0 0.0
    %125 = vmatprep.subr.mxu0 0.0
    %126 = vmatpush1.msra.mxu0 0.0
    %127 = vmatprep.mubr.f32.mxu0 0.0
    %128 = vmatmul.mubr.f32.gmra.mrb[0].mxu0 %v59
    %v129 = vpop.f32.mrb[0].mxu0
    %v130 = vadd.f32 %v55, %v129
    %v131 = vpop.f32.mrb[0].mxu0
    %132 = vdwg.mxu0
    %vm133 = vcmask 261120
    %134 = vst.msk [vmem:[#allocation2] sm:$0xff] %vm133, %v130
    // Predicated region
    $region14: #{tpu_custom_call.1} parent=1 // pred_check
      _
    $region15: #{tpu_custom_call.1} parent=1 // pred_check_branch
      %136 = sbr.rel (0) target = $region17
    $region16: #{tpu_custom_call.1} parent=1 // pred_region
      %s138 = ssub.s32 128, 128
      %139 = vsyncadd [#allocation3], %s138
      %s141 = sshll.u32 [#allocation2], 4
      %s142 = int_to_ptr.vmem [resolvable:$true] %s141
      %144 = dma.vmem_to_hbm [thread:$0]  %s142, 128, %s3, [#allocation3]
    $region17: #{tpu_custom_call.1} parent=1 // pred_fallthru
      _
    // Predicated region
    $region18: #{tpu_custom_call.1} parent=1 // pred_check
      _
    $region19: #{tpu_custom_call.1} parent=1 // pred_check_branch
      %146 = sbr.rel (0) target = $region21
    $region20: #{tpu_custom_call.1} parent=1 // pred_region
      %147 = dma.done [#allocation3], 128
    $region21: #{tpu_custom_call.1} parent=1 // pred_fallthru
      _
    %148 = vsyncpa [#allocation3], 1

</llo_original>
